<compile_context>
chip_gen: v7x
topology: tpu7x:2x2x1
jax: 0.10.0
libtpu: 0.0.40
codegen_flags: <defaults>
</compile_context>

<pallas_src>
import jax
import jax.numpy as jnp
from jax.experimental import pallas as pl
from jax.experimental.pallas import tpu as pltpu


def _round_up(n, m):
    return ((n + m - 1) // m) * m


def inst_dropout_forward(x_nchw, dropout_mask, out_channel):
    B, C_in, H, W = x_nchw.shape
    K = out_channel
    F = K * C_in                      # num_features; torch channel order is k*C_in + c
    HW = H * W

    # Spatial dims flattened onto the lane axis.
    x = x_nchw.reshape(B, C_in, HW)

    # relu + dtype cast hoisted out of the kernel.  (K, C_in, 1) puts C_in on the
    # sublane axis (matching the output layout) and leaves a size-1 lane dim so the
    # in-kernel broadcast is a pure lane splat.
    mask = jnp.maximum(dropout_mask, 0.0).astype(x.dtype).reshape(K, C_in, 1)

    # ---- padding-aware tile selection ------------------------------------------
    itemsize = jnp.dtype(x.dtype).itemsize
    sub = max(8, 32 // itemsize)          # sublane multiple: 8 f32, 16 bf16, 32 int8
    hw_pad = _round_up(HW, 128)
    out_row_bytes = _round_up(F, sub) * hw_pad * itemsize     # padded bytes / batch el.
    in_row_bytes = _round_up(C_in, sub) * hw_pad * itemsize

    try:
        vmem_cap = int(pltpu.get_tpu_info().vmem_capacity_bytes)
    except Exception:
        vmem_cap = 64 * 1024 * 1024       # v7x per-TC size; safe lower bound everywhere
    vmem_limit = (vmem_cap * 7) // 8                      # headroom for compiler scratch
    vmem_budget = vmem_limit - 8 * 1024 * 1024            # double-buffered tile budget

    max_tb_vmem = max(1, vmem_budget // (2 * (out_row_bytes + in_row_bytes)))
    target_tb = max(1, (4 * 1024 * 1024) // out_row_bytes)  # ~4 MiB padded output tiles
    tb = int(min(B, max_tb_vmem, target_tb))
    if B >= 2:                            # keep >= 2 parallel steps for v7x's 2 TCs
        tb = min(tb, (B + 1) // 2)
    tb = max(1, tb)
    grid_b = pl.cdiv(B, tb)               # ragged last block OK (OOB writes are masked)

    # ---- kernel -----------------------------------------------------------------
    def kernel(x_ref, m_ref, o_ref):
        xv = x_ref[...]                   # (tb, C_in, HW)
        mv = m_ref[...]                   # (K, C_in, 1), relu already applied, x.dtype
        # out[b, k*C_in + c, :] = x[b, c, :] * m[k, c]; each output vreg comes from a
        # single vmul (mv[k] lane-broadcasts over HW), stored into the packed F axis.
        for k in range(K):                # static unroll; K is known at trace time
            o_ref[:, k * C_in:(k + 1) * C_in, :] = (xv * mv[k]).astype(o_ref.dtype)

    out = pl.pallas_call(
        kernel,
        out_shape=jax.ShapeDtypeStruct((B, F, HW), x.dtype),
        grid_spec=pltpu.PrefetchScalarGridSpec(
            num_scalar_prefetch=0,
            grid=(grid_b,),
            in_specs=[
                pl.BlockSpec((tb, C_in, HW), lambda b: (b, 0, 0)),
                # Constant block index -> mask stays VMEM-resident across grid steps.
                pl.BlockSpec((K, C_in, 1), lambda b: (0, 0, 0)),
            ],
            out_specs=pl.BlockSpec((tb, F, HW), lambda b: (b, 0, 0)),
        ),
        compiler_params=pltpu.CompilerParams(
            dimension_semantics=("parallel",),
            vmem_limit_bytes=int(vmem_limit),
        ),
    )(x, mask)

    # (B, F, HW) is contiguous-identical to (B, num_features, H, W); metadata reshape.
    return out.reshape(B, F, H, W)


if __name__ == "__main__":
    key = jax.random.PRNGKey(0)
    kx, km = jax.random.split(key)

    # Small shapes consistent with the module: NCHW input, mask (1, in*out).
    B, C_in, out_channel, H, W = 2, 3, 4, 16, 16
    num_features = C_in * out_channel

    x = jax.random.normal(kx, (B, C_in, H, W), dtype=jnp.float32)
    # condition is accepted by forward() but unused when use_conv_condition=False
    condition = jnp.zeros((B, C_in, H, W), dtype=jnp.float32)
    # reset_parameters(): dropout_mask.uniform_() -> U[0, 1)
    dropout_mask = jax.random.uniform(km, (1, num_features), dtype=jnp.float32)

    out = inst_dropout_forward(x, dropout_mask, out_channel)
    out = jax.block_until_ready(out)

    # Independent pure-JAX reference: output channel f = k*C_in + c reads input
    # channel f % C_in (validates the repeat ordering without using jnp.tile).
    f_idx = jnp.arange(num_features)
    noise = jnp.maximum(dropout_mask, 0.0).reshape(1, num_features, 1, 1)
    ref = x[:, f_idx % C_in, :, :] * noise

    assert out.shape == (B, num_features, H, W), out.shape
    assert jnp.allclose(out, ref, atol=1e-6), "mismatch vs reference"

    print("KERNEL_OK")
</pallas_src>

<mosaic_0001>
module attributes {stable_mosaic.version = 11 : i64} {
  func.func @kernel(%arg0: i32, %arg1: memref<1x3x256xf32, #tpu.memory_space<vmem>>, %arg2: memref<4x3x1xf32, #tpu.memory_space<vmem>>, %arg3: memref<1x12x256xf32, #tpu.memory_space<vmem>>) attributes {dimension_semantics = [#tpu.dimension_semantics<parallel>], iteration_bounds = array<i64: 2>, scalar_prefetch = 0 : i64, scratch_operands = 0 : i64, tpu.core_type = #tpu.core_type<tc>, window_params = [{transform_indices = @transform_0, window_bounds = array<i64: 1, 3, 256>}, {pipeline_mode = #tpu.pipeline_mode<synchronous>, transform_indices = @transform_1, window_bounds = array<i64: 4, 3, 1>}, {transform_indices = @transform_2, window_bounds = array<i64: 1, 12, 256>}]} {
    %c0 = arith.constant 0 : index
    %c0_0 = arith.constant 0 : index
    %c0_1 = arith.constant 0 : index
    %0 = vector.load %arg1[%c0, %c0_0, %c0_1] : memref<1x3x256xf32, #tpu.memory_space<vmem>>, vector<1x3x256xf32>
    %c0_2 = arith.constant 0 : index
    %c0_3 = arith.constant 0 : index
    %c0_4 = arith.constant 0 : index
    %1 = vector.load %arg2[%c0_2, %c0_3, %c0_4] : memref<4x3x1xf32, #tpu.memory_space<vmem>>, vector<4x3x1xf32>
    %2 = vector.extract_strided_slice %1 {offsets = [0, 0, 0], sizes = [1, 3, 1], strides = [1, 1, 1]} : vector<4x3x1xf32> to vector<1x3x1xf32>
    %3 = vector.shape_cast %2 : vector<1x3x1xf32> to vector<3x1xf32>
    %4 = vector.shape_cast %3 : vector<3x1xf32> to vector<1x3x1xf32>
    %5 = vector.broadcast %4 : vector<1x3x1xf32> to vector<1x3x256xf32>
    %6 = arith.mulf %0, %5 : vector<1x3x256xf32>
    %c0_5 = arith.constant 0 : index
    %c0_6 = arith.constant 0 : index
    %c0_7 = arith.constant 0 : index
    %7 = vector.load %arg3[%c0_5, %c0_6, %c0_7] : memref<1x12x256xf32, #tpu.memory_space<vmem>>, vector<1x3x256xf32>
    tpu.vector_store %arg3[%c0_5, %c0_6, %c0_7], %6 {strides = array<i32>} : memref<1x12x256xf32, #tpu.memory_space<vmem>>, vector<1x3x256xf32>,
    %8 = vector.extract_strided_slice %1 {offsets = [1, 0, 0], sizes = [1, 3, 1], strides = [1, 1, 1]} : vector<4x3x1xf32> to vector<1x3x1xf32>
    %9 = vector.shape_cast %8 : vector<1x3x1xf32> to vector<3x1xf32>
    %10 = vector.shape_cast %9 : vector<3x1xf32> to vector<1x3x1xf32>
    %11 = vector.broadcast %10 : vector<1x3x1xf32> to vector<1x3x256xf32>
    %12 = arith.mulf %0, %11 : vector<1x3x256xf32>
    %c0_8 = arith.constant 0 : index
    %c3 = arith.constant 3 : index
    %c0_9 = arith.constant 0 : index
    %13 = vector.load %arg3[%c0_8, %c3, %c0_9] : memref<1x12x256xf32, #tpu.memory_space<vmem>>, vector<1x3x256xf32>
    tpu.vector_store %arg3[%c0_8, %c3, %c0_9], %12 {strides = array<i32>} : memref<1x12x256xf32, #tpu.memory_space<vmem>>, vector<1x3x256xf32>,
    %14 = vector.extract_strided_slice %1 {offsets = [2, 0, 0], sizes = [1, 3, 1], strides = [1, 1, 1]} : vector<4x3x1xf32> to vector<1x3x1xf32>
    %15 = vector.shape_cast %14 : vector<1x3x1xf32> to vector<3x1xf32>
    %16 = vector.shape_cast %15 : vector<3x1xf32> to vector<1x3x1xf32>
    %17 = vector.broadcast %16 : vector<1x3x1xf32> to vector<1x3x256xf32>
    %18 = arith.mulf %0, %17 : vector<1x3x256xf32>
    %c0_10 = arith.constant 0 : index
    %c6 = arith.constant 6 : index
    %c0_11 = arith.constant 0 : index
    %19 = vector.load %arg3[%c0_10, %c6, %c0_11] : memref<1x12x256xf32, #tpu.memory_space<vmem>>, vector<1x3x256xf32>
    tpu.vector_store %arg3[%c0_10, %c6, %c0_11], %18 {strides = array<i32>} : memref<1x12x256xf32, #tpu.memory_space<vmem>>, vector<1x3x256xf32>,
    %20 = vector.extract_strided_slice %1 {offsets = [3, 0, 0], sizes = [1, 3, 1], strides = [1, 1, 1]} : vector<4x3x1xf32> to vector<1x3x1xf32>
    %21 = vector.shape_cast %20 : vector<1x3x1xf32> to vector<3x1xf32>
    %22 = vector.shape_cast %21 : vector<3x1xf32> to vector<1x3x1xf32>
    %23 = vector.broadcast %22 : vector<1x3x1xf32> to vector<1x3x256xf32>
    %24 = arith.mulf %0, %23 : vector<1x3x256xf32>
    %c0_12 = arith.constant 0 : index
    %c9 = arith.constant 9 : index
    %c0_13 = arith.constant 0 : index
    %25 = vector.load %arg3[%c0_12, %c9, %c0_13] : memref<1x12x256xf32, #tpu.memory_space<vmem>>, vector<1x3x256xf32>
    tpu.vector_store %arg3[%c0_12, %c9, %c0_13], %24 {strides = array<i32>} : memref<1x12x256xf32, #tpu.memory_space<vmem>>, vector<1x3x256xf32>,
    return
  }
  func.func @transform_0(%arg0: i32) -> (i32, i32, i32) {
    %c0_i32 = arith.constant 0 : i32
    %c0_i32_0 = arith.constant 0 : i32
    %c0_i32_1 = arith.constant 0 : i32
    return %arg0, %c0_i32, %c0_i32_0 : i32, i32, i32
  }
  func.func @transform_1(%arg0: i32) -> (i32, i32, i32) {
    %c0_i32 = arith.constant 0 : i32
    %c0_i32_0 = arith.constant 0 : i32
    %c0_i32_1 = arith.constant 0 : i32
    %c0_i32_2 = arith.constant 0 : i32
    return %c0_i32, %c0_i32_0, %c0_i32_1 : i32, i32, i32
  }
  func.func @transform_2(%arg0: i32) -> (i32, i32, i32) {
    %c0_i32 = arith.constant 0 : i32
    %c0_i32_0 = arith.constant 0 : i32
    %c0_i32_1 = arith.constant 0 : i32
    return %arg0, %c0_i32, %c0_i32_0 : i32, i32, i32
  }
}

</mosaic_0001>

<llo_original>
// kernel: tpu_custom_call.1
$region0: #{tpu_custom_call.1}
  #allocation0 [shape = 'u32[]', space=smem, size = 0x4, offset = 0x4, fixed_abs, tag = 'smem constant byte address 0x4 - core index']
  #allocation1 [shape = 'u32[144,128]{1,0:T(1,128)}', space=vmem, size = 0x12000, scoped, tag = 'internal scratch']
  %s0 = inlined_call_operand.vmem [shape: f32[2,3,256], index: 0, kind: input, shape index: {}]
  %s1 = inlined_call_operand.vmem [shape: f32[4,3,1], index: 1, kind: input, shape index: {}]
  %s2 = inlined_call_operand.vmem [shape: f32[2,12,256], index: 2, kind: output, shape index: {}]
  %s3 = sld [smem:[#allocation0]]
  $region41: #{tpu_custom_call.1} parent=0
    _
  %s5 = ssub.s32 1, %s3
  %s6 = scalar_select 0, %s5, %s3
  loop: start=0, step=1, limit=4
  $region2: #{tpu_custom_call.1} parent=0 // loop_pre_header
    _
  $region3: #{tpu_custom_call.1} parent=0 // loop_header
    %s8 = sphi 0, %s12
    %p9 = scmp.ge.s32.totalorder %s8, 4
    %s18 = sphi 0, %s20
    %s21 = sphi 0, %s18
    %s22 = sphi 0, %s21
    %s38 = sphi 0, %s22
    %s42 = sphi 0, %s42
    %s44 = sphi 0, %s42
    %s45 = sphi 0, %s44
    %s59 = sphi 0, %s45
    %s65 = sphi 0, %s67
    %s68 = sphi 0, %s65
    %s69 = sphi 0, %s68
    %s85 = sphi 0, %s69
  $region4: #{tpu_custom_call.1} parent=0 // loop_header_branch
    %11 = sbr.rel (%p9) target = $region8
  $region5: #{tpu_custom_call.1} parent=0 // loop_body
    %s13 = ssub.s32 %s8, 1
    %s14 = ssub.s32 %s8, 2
    %s15 = sadd.s32 %s8, 1
    %s16 = ssub.s32 %s8, %s15
    %p17 = scmp.eq.s32.totalorder %s16, 0
    %s19 = sadd.s32 %s18, 1
    %s20 = scalar_select %p17, %s18, %s19
    %p23 = pneg %p17
    %p24 = scmp.eq.s32.totalorder %s8, 1
    %p25 = por %p23, %p24
    %p26 = scmp.ne.s32.totalorder %s18, %s21
    %p27 = scmp.eq.s32.totalorder %s8, 0
    %p28 = por %p26, %p27
    %p29 = scmp.ne.s32.totalorder %s18, %s21
    %p30 = scmp.eq.s32.totalorder %s13, 1
    %p31 = por %p29, %p30
    %p32 = scmp.ne.s32.totalorder %s21, %s22
    %p33 = scmp.eq.s32.totalorder %s13, 0
    %p34 = por %p32, %p33
    %p35 = scmp.ne.s32.totalorder %s21, %s22
    %p36 = scmp.eq.s32.totalorder %s14, 1
    %p37 = por %p35, %p36
    %p39 = scmp.ne.s32.totalorder %s22, %s38
    %p40 = scmp.eq.s32.totalorder %s14, 0
    %p41 = por %p39, %p40
    %s43 = sadd.s32 %s42, 1
    %p46 = scmp.eq.s32.totalorder %s8, 1
    %p47 = scmp.ne.s32.totalorder %s42, %s44
    %p48 = scmp.eq.s32.totalorder %s8, 0
    %p49 = por %p47, %p48
    %p50 = scmp.ne.s32.totalorder %s42, %s44
    %p51 = scmp.eq.s32.totalorder %s13, 1
    %p52 = por %p50, %p51
    %p53 = scmp.ne.s32.totalorder %s44, %s45
    %p54 = scmp.eq.s32.totalorder %s13, 0
    %p55 = por %p53, %p54
    %p56 = scmp.ne.s32.totalorder %s44, %s45
    %p57 = scmp.eq.s32.totalorder %s14, 1
    %p58 = por %p56, %p57
    %p60 = scmp.ne.s32.totalorder %s45, %s59
    %p61 = scmp.eq.s32.totalorder %s14, 0
    %p62 = por %p60, %p61
    %s63 = ssub.s32 %s8, %s15
    %p64 = scmp.eq.s32.totalorder %s63, 0
    %s66 = sadd.s32 %s65, 1
    %s67 = scalar_select %p64, %s65, %s66
    %p70 = pneg %p64
    %p71 = scmp.eq.s32.totalorder %s8, 1
    %p72 = por %p70, %p71
    %p73 = scmp.ne.s32.totalorder %s65, %s68
    %p74 = scmp.eq.s32.totalorder %s8, 0
    %p75 = por %p73, %p74
    %p76 = scmp.ne.s32.totalorder %s65, %s68
    %p77 = scmp.eq.s32.totalorder %s13, 1
    %p78 = por %p76, %p77
    %p79 = scmp.ne.s32.totalorder %s68, %s69
    %p80 = scmp.eq.s32.totalorder %s13, 0
    %p81 = por %p79, %p80
    %p82 = scmp.ne.s32.totalorder %s68, %s69
    %p83 = scmp.eq.s32.totalorder %s14, 1
    %p84 = por %p82, %p83
    %p86 = scmp.ne.s32.totalorder %s69, %s85
    %p87 = scmp.eq.s32.totalorder %s14, 0
    %p88 = por %p86, %p87
    %p89 = scmp.le.s32.totalorder 1, %s8
    %p90 = scmp.lt.s32.totalorder %s8, 3
    %p91 = pnand %p89, %p90
    %p92 = pneg %p91
    // Predicated region
    $region9: #{tpu_custom_call.1} parent=5 // pred_check
      _
    $region10: #{tpu_custom_call.1} parent=5 // pred_check_branch
      %94 = sbr.rel (%p91) target = $region12
    $region11: #{tpu_custom_call.1} parent=5 // pred_region
      %s95 = ssub.s32 %s8, 1
      // Predicated region
      $region13: #{tpu_custom_call.1} parent=11 // pred_check
        %p96 = pneg %p55
      $region14: #{tpu_custom_call.1} parent=11 // pred_check_branch
        %98 = sbr.rel (%p96) target = $region16
      $region15: #{tpu_custom_call.1} parent=11 // pred_region
        _
      $region16: #{tpu_custom_call.1} parent=11 // pred_fallthru
        _
    $region12: #{tpu_custom_call.1} parent=5 // pred_fallthru
      _
    %p99 = scmp.lt.s32.totalorder %s8, 2
    // Predicated region
    $region17: #{tpu_custom_call.1} parent=5 // pred_check
      %p100 = pneg %p99
    $region18: #{tpu_custom_call.1} parent=5 // pred_check_branch
      %102 = sbr.rel (%p100) target = $region20
    $region19: #{tpu_custom_call.1} parent=5 // pred_region
      // Predicated region
      $region21: #{tpu_custom_call.1} parent=19 // pred_check
        %p103 = pneg %p28
      $region22: #{tpu_custom_call.1} parent=19 // pred_check_branch
        %105 = sbr.rel (%p103) target = $region24
      $region23: #{tpu_custom_call.1} parent=19 // pred_region
        %p106 = scmp.lt.s32.totalorder %s8, 1
        %s107 = scalar_select %p106, %s8, 1
        %s108 = smul.addr %s107, 2
        %s109 = smul.addr %s108, 4
        %s110 = scalar_lea.vmem %s0, %s109
      $region24: #{tpu_custom_call.1} parent=19 // pred_fallthru
        _
    $region20: #{tpu_custom_call.1} parent=5 // pred_fallthru
      _
    %p111 = scmp.le.s32.totalorder 1, %s8
    %p112 = scmp.lt.s32.totalorder %s8, 3
    %p113 = pnand %p111, %p112
    %p114 = pneg %p113
    // Predicated region
    $region25: #{tpu_custom_call.1} parent=5 // pred_check
      _
    $region26: #{tpu_custom_call.1} parent=5 // pred_check_branch
      %116 = sbr.rel (%p113) target = $region28
    $region27: #{tpu_custom_call.1} parent=5 // pred_region
      %s117 = ssub.s32 %s8, 1
      %p118 = scmp.lt.s32.totalorder %s13, 1
      %s119 = scalar_select %p118, %s13, 1
      %s120 = smul.addr %s119, 2
      %s121 = smul.addr %s120, 4
      %s122 = scalar_lea.vmem %s0, %s121
      %p123 = pneg %p34
      %p124 = pneg %p31
      %p125 = pneg %p55
      %p126 = pneg %p52
      %p127 = pneg %p81
      %p128 = pneg %p78
      %p129 = scmp.lt.s32.totalorder %s13, 1
      %s130 = scalar_select %p129, %s13, 1
      %s131 = smul.addr %s130, 4
      %s132 = smul.addr %s131, 8
      %s133 = scalar_lea.vmem %s2, %s132
      %p134 = scmp.lt.s32.totalorder %s13, 1
      %s135 = scalar_select %p134, %s13, 1
      %s136 = smul.addr %s135, 2
      %s137 = smul.addr %s136, 4
      %s138 = scalar_lea.vmem %s0, %s137
      %p139 = scmp.lt.s32.totalorder %s13, 1
      %s140 = scalar_select %p139, %s13, 1
      %s141 = smul.addr %s140, 4
      %s142 = smul.addr %s141, 8
      %s143 = scalar_lea.vmem %s2, %s142
      %v144 = vld [vmem:[%s138] sm:$0x77]
      %v145 = vld [vmem:[%s1] sm:$0x7]
      %v146 = vld [vmem:[%s1 + $0x4] sm:$0x7]
      %v147 = vld [vmem:[%s1 + $0x8] sm:$0x7]
      %v148 = vld [vmem:[%s1 + $0xc] sm:$0x7]
      %150 = vset.pattern.permute.xlu0 0
      %151 = vperm.xlu0 %150, %v145
      %v152 = vpop.permute.xlu0 %151
      %v154 = vunpack.c.l.s4 839922192
      %v155 = vunpack.c.0.s8 %v154
      %v156 = vlaneseq
      %v157 = vshrl.u32 %v156, 7
      %v158 = vsub.s32 %v155, %v157
      %v159 = vrot.slane %v152, %v158
      %v161 = vmul.f32 %v144, %v159
      %v163 = vcombine.high %v161, %v161
      %165 = vst [vmem:[%s143] sm:$0x7] %v161
      %166 = vst [vmem:[%s143 + $0x8] sm:$0x7] %v163
      %168 = vset.pattern.permute.xlu0 0
      %169 = vperm.xlu0 %168, %v146
      %v170 = vpop.permute.xlu0 %169
      %v172 = vunpack.c.l.s4 839922192
      %v173 = vunpack.c.0.s8 %v172
      %v174 = vlaneseq
      %v175 = vshrl.u32 %v174, 7
      %v176 = vsub.s32 %v173, %v175
      %v177 = vrot.slane %v170, %v176
      %v179 = vmul.f32 %v144, %v177
      %v181 = vcombine.high %v179, %v179
      %v182 = vrot.slane %v179, 5
      %v183 = vrot.slane %v181, 5
      %186 = vst [vmem:[%s143] sm:$0x38] %v182
      %187 = vst [vmem:[%s143 + $0x8] sm:$0x38] %v183
      %189 = vset.pattern.permute.xlu0 0
      %190 = vperm.xlu0 %189, %v147
      %v191 = vpop.permute.xlu0 %190
      %v193 = vunpack.c.l.s4 839922192
      %v194 = vunpack.c.0.s8 %v193
      %v195 = vlaneseq
      %v196 = vshrl.u32 %v195, 7
      %v197 = vsub.s32 %v194, %v196
      %v198 = vrot.slane %v191, %v197
      %v200 = vmul.f32 %v144, %v198
      %v202 = vcombine.high %v200, %v200
      %v203 = vrot.slane %v200, 2
      %v204 = vrot.slane %v202, 2
      %207 = vst [vmem:[%s143] sm:$0xc0] %v203
      %208 = vst [vmem:[%s143 + $0x8] sm:$0xc0] %v204
      %209 = vst [vmem:[%s143 + $0x10] sm:$0x1] %v203
      %210 = vst [vmem:[%s143 + $0x18] sm:$0x1] %v204
      %212 = vset.pattern.permute.xlu0 0
      %213 = vperm.xlu0 %212, %v148
      %v214 = vpop.permute.xlu0 %213
      %v216 = vunpack.c.l.s4 839922192
      %v217 = vunpack.c.0.s8 %v216
      %v218 = vlaneseq
      %v219 = vshrl.u32 %v218, 7
      %v220 = vsub.s32 %v217, %v219
      %v221 = vrot.slane %v214, %v220
      %v223 = vmul.f32 %v144, %v221
      %v225 = vcombine.high %v223, %v223
      %v226 = vrot.slane %v223, 7
      %v227 = vrot.slane %v225, 7
      %230 = vst [vmem:[%s143 + $0x10] sm:$0xe] %v226
      %231 = vst [vmem:[%s143 + $0x18] sm:$0xe] %v227
      %p232 = scmp.lt.s32.totalorder %s13, 1
      %s233 = scalar_select %p232, %s13, 1
      %s234 = smul.addr %s233, 4
      %s235 = smul.addr %s234, 8
      %s236 = scalar_lea.vmem %s2, %s235
      // Predicated region
      $region29: #{tpu_custom_call.1} parent=27 // pred_check
        %p237 = pneg %p78
      $region30: #{tpu_custom_call.1} parent=27 // pred_check_branch
        %239 = sbr.rel (%p237) target = $region32
      $region31: #{tpu_custom_call.1} parent=27 // pred_region
        _
      $region32: #{tpu_custom_call.1} parent=27 // pred_fallthru
        _
    $region28: #{tpu_custom_call.1} parent=5 // pred_fallthru
      _
    %p240 = scmp.le.s32.totalorder 2, %s8
    // Predicated region
    $region33: #{tpu_custom_call.1} parent=5 // pred_check
      %p241 = pneg %p240
    $region34: #{tpu_custom_call.1} parent=5 // pred_check_branch
      %243 = sbr.rel (%p241) target = $region36
    $region35: #{tpu_custom_call.1} parent=5 // pred_region
      %s244 = ssub.s32 %s8, 2
      // Predicated region
      $region37: #{tpu_custom_call.1} parent=35 // pred_check
        %p245 = pneg %p84
      $region38: #{tpu_custom_call.1} parent=35 // pred_check_branch
        %247 = sbr.rel (%p245) target = $region40
      $region39: #{tpu_custom_call.1} parent=35 // pred_region
        %p248 = scmp.lt.s32.totalorder %s14, 1
        %s249 = scalar_select %p248, %s14, 1
        %s250 = smul.addr %s249, 4
        %s251 = smul.addr %s250, 8
        %s252 = scalar_lea.vmem %s2, %s251
      $region40: #{tpu_custom_call.1} parent=35 // pred_fallthru
        _
    $region36: #{tpu_custom_call.1} parent=5 // pred_fallthru
      _
  $region6: #{tpu_custom_call.1} parent=0 // loop_footer
    %s12 = sadd.s32 1, %s8
  $region7: #{tpu_custom_call.1} parent=0 // loop_footer_branch
    %7 = sbr.rel target = $region3
  $region8: #{tpu_custom_call.1} parent=0 // loop_exit
    _

</llo_original>
